<compile_context>
chip_gen: v6e
topology: v6e:2x2x1
jax: 0.10.0
libtpu: 0.0.40
codegen_flags: <defaults>
</compile_context>

<pallas_src>
import functools

import jax
import jax.numpy as jnp
from jax.experimental import pallas as pl
from jax.experimental.pallas import tpu as pltpu


def _attention_kernel(x_ref, w_ref, b_ref, o_ref):
    # x_ref : (Bb, S, W)    activations for this batch block
    # w_ref : (W, 3E)       fused Wq|Wk|Wv (scale already folded into Wq)
    # b_ref : (1, 3E)       fused bq|bk|bv (scale already folded into bq)
    # o_ref : (Bb, S*E)     lane-dense output slab (one 128-lane row per seq)
    Bb, S, W = x_ref.shape
    E = w_ref.shape[1] // 3

    # Single fused QKV projection for the whole batch block: one MXU push.
    x2d = x_ref[...].reshape(Bb * S, W)                               # (Bb*S, W)
    qkv = jnp.dot(x2d, w_ref[...], preferred_element_type=jnp.float32)
    qkv = (qkv + b_ref[...]).reshape(Bb, S, 3 * E)                    # (Bb, S, 3E)

    q = qkv[:, :, 0 * E:1 * E]   # 1/sqrt(E) already folded into Wq / bq
    k = qkv[:, :, 1 * E:2 * E]
    v = qkv[:, :, 2 * E:3 * E]

    # score = Q K^T, batched, contracting E (no materialized transpose).
    score = jnp.einsum("bqd,bkd->bqk", q, k,
                       preferred_element_type=jnp.float32)            # (Bb, S, S)

    # Numerically stable softmax along the last dim, all math in f32.
    score = score - jnp.max(score, axis=-1, keepdims=True)
    p = jnp.exp(score)
    p = p * pl.reciprocal(jnp.sum(p, axis=-1, keepdims=True), approx=True)

    # Z = softmax(score) @ V, then store as a lane-dense (Bb, S*E) slab.
    z = jnp.einsum("bqk,bkd->bqd", p, v,
                   preferred_element_type=jnp.float32)                # (Bb, S, E)
    o_ref[...] = z.reshape(Bb, S * E)


def prepare_attention_params(wq, bq, wk, bk, wv, bv):
    """One-time ("module init") fusion of the Q/K/V projection parameters.

    wq/wk/wv : (W, E) stored so that y = x @ W + b.
    Returns (w_qkv (W, 3E), b_qkv (1, 3E)) with 1/sqrt(E) folded into Q.
    """
    E = wq.shape[1]
    scale = 1.0 / jnp.sqrt(jnp.float32(E))
    w_qkv = jnp.concatenate([wq * scale, wk, wv], axis=1).astype(jnp.float32)
    b_qkv = jnp.concatenate([bq * scale, bk, bv]).reshape(1, 3 * E).astype(jnp.float32)
    return w_qkv, b_qkv


@functools.partial(jax.jit, static_argnames=("batch_blocks",))
def attention_forward(x, w_qkv, b_qkv, *, batch_blocks=None):
    """Fused attention forward.

    x          : (S, W) or (B, S, W) float32
    w_qkv      : (W, 3E) fused weights from prepare_attention_params
    b_qkv      : (1, 3E) fused bias    from prepare_attention_params
    batch_blocks: grid steps over the batch.  None -> 2 if the batch splits
                  evenly (feeds both v7x TensorCores in one step each), else 1.
                  Use 1 for the minimum-overhead single step on v5e/v6e.
    """
    squeeze = x.ndim == 2
    if squeeze:
        x = x[None]
    B, S, W = x.shape
    E3 = w_qkv.shape[1]
    E = E3 // 3

    if batch_blocks is None:
        batch_blocks = 2 if (B >= 2 and B % 2 == 0) else 1
    assert B % batch_blocks == 0, "batch must divide evenly into batch_blocks"
    Bb = B // batch_blocks

    out = pl.pallas_call(
        _attention_kernel,
        # Lane-dense output: one (S*E)-wide row per sequence; reshaped below.
        out_shape=jax.ShapeDtypeStruct((batch_blocks, Bb, S * E), jnp.float32),
        grid=(batch_blocks,),
        in_specs=[
            # Per-step activation block: last two dims are the full (S, W).
            pl.BlockSpec((Bb, S, W), lambda g: (g, 0, 0)),
            # Weights / bias are grid-invariant: constant block index keeps
            # them resident in VMEM across all grid steps (no re-DMA).
            pl.BlockSpec((W, E3), lambda g: (0, 0)),
            pl.BlockSpec((1, E3), lambda g: (0, 0)),
        ],
        out_specs=pl.BlockSpec((None, Bb, S * E), lambda g: (g, 0, 0)),
        compiler_params=pltpu.CompilerParams(
            dimension_semantics=("parallel",)),   # shards the 2-step grid across v7x TCs
    )(x, w_qkv, b_qkv)

    out = out.reshape(B, S, E)
    return out[0] if squeeze else out


def _reference(x, wq, bq, wk, bk, wv, bv):
    q = x @ wq + bq
    k = x @ wk + bk
    v = x @ wv + bv
    s = (q @ k.T) / jnp.sqrt(jnp.float32(wq.shape[1]))
    p = jax.nn.softmax(s, axis=-1)
    return p @ v


if __name__ == "__main__":
    # Small shapes consistent with the module: batch=4, seq=8, word=32, embed=16.
    B, S, WORD, EMBED = 4, 8, 32, 16

    key = jax.random.PRNGKey(0)
    kx, kq, kbq, kk, kbk, kv, kbv = jax.random.split(key, 7)

    x = jax.random.normal(kx, (B, S, WORD), dtype=jnp.float32)

    # Deterministic parameter init (Linear weight stored here as (in, out)).
    init = 1.0 / jnp.sqrt(jnp.float32(WORD))
    wq = jax.random.uniform(kq, (WORD, EMBED), jnp.float32, -init, init)
    bq = jax.random.uniform(kbq, (EMBED,), jnp.float32, -init, init)
    wk = jax.random.uniform(kk, (WORD, EMBED), jnp.float32, -init, init)
    bk = jax.random.uniform(kbk, (EMBED,), jnp.float32, -init, init)
    wv = jax.random.uniform(kv, (WORD, EMBED), jnp.float32, -init, init)
    bv = jax.random.uniform(kbv, (EMBED,), jnp.float32, -init, init)

    # Module-init-time parameter fusion (hoisted out of the per-call path).
    w_qkv, b_qkv = prepare_attention_params(wq, bq, wk, bk, wv, bv)
    w_qkv, b_qkv = jax.block_until_ready((w_qkv, b_qkv))

    z_ref = jax.vmap(lambda xb: _reference(xb, wq, bq, wk, bk, wv, bv))(x)

    # Default path (auto batch_blocks=2: one step per v7x TensorCore).
    z = jax.block_until_ready(attention_forward(x, w_qkv, b_qkv))
    assert z.shape == (B, S, EMBED)
    assert jnp.allclose(z, z_ref, atol=2e-3, rtol=2e-3), "default path mismatch"

    # Single-step path (minimum grid overhead on 1-TC v5e/v6e).
    z1 = jax.block_until_ready(attention_forward(x, w_qkv, b_qkv, batch_blocks=1))
    assert jnp.allclose(z1, z_ref, atol=2e-3, rtol=2e-3), "single-step path mismatch"

    # 2D (single-sequence) call matches the original module's interface.
    z0 = jax.block_until_ready(attention_forward(x[0], w_qkv, b_qkv))
    assert z0.shape == (S, EMBED)
    assert jnp.allclose(z0, z_ref[0], atol=2e-3, rtol=2e-3), "2D path mismatch"

    print("KERNEL_OK")
</pallas_src>

<mosaic_0001>
module attributes {stable_mosaic.version = 11 : i64} {
  func.func @_attention_kernel(%arg0: i32, %arg1: memref<2x8x32xf32, #tpu.memory_space<vmem>>, %arg2: memref<32x48xf32, #tpu.memory_space<vmem>>, %arg3: memref<1x48xf32, #tpu.memory_space<vmem>>, %arg4: memref<1x2x128xf32, #tpu.memory_space<vmem>>) attributes {dimension_semantics = [#tpu.dimension_semantics<parallel>], iteration_bounds = array<i64: 2>, scalar_prefetch = 0 : i64, scratch_operands = 0 : i64, tpu.core_type = #tpu.core_type<tc>, window_params = [{transform_indices = @transform_0, window_bounds = array<i64: 2, 8, 32>}, {pipeline_mode = #tpu.pipeline_mode<synchronous>, transform_indices = @transform_1, window_bounds = array<i64: 32, 48>}, {pipeline_mode = #tpu.pipeline_mode<synchronous>, transform_indices = @transform_2, window_bounds = array<i64: 1, 48>}, {transform_indices = @transform_3, window_bounds = array<i64: 1, 2, 128>}]} {
    %c0 = arith.constant 0 : index
    %c0_0 = arith.constant 0 : index
    %c0_1 = arith.constant 0 : index
    %0 = vector.load %arg1[%c0, %c0_0, %c0_1] : memref<2x8x32xf32, #tpu.memory_space<vmem>>, vector<2x8x32xf32>
    %1 = vector.shape_cast %0 : vector<2x8x32xf32> to vector<16x32xf32>
    %c0_2 = arith.constant 0 : index
    %c0_3 = arith.constant 0 : index
    %2 = vector.load %arg2[%c0_2, %c0_3] : memref<32x48xf32, #tpu.memory_space<vmem>>, vector<32x48xf32>
    %cst = arith.constant dense<0.000000e+00> : vector<16x48xf32>
    %3 = tpu.matmul %1, %2, %cst {dimension_numbers = #tpu.dot_dimension_numbers<[1], [0], [0], [1], [0, 0, 1, 1], [], []>} : vector<16x32xf32>, vector<32x48xf32>, vector<16x48xf32> -> vector<16x48xf32>
    %c0_4 = arith.constant 0 : index
    %c0_5 = arith.constant 0 : index
    %4 = vector.load %arg3[%c0_4, %c0_5] : memref<1x48xf32, #tpu.memory_space<vmem>>, vector<1x48xf32>
    %5 = vector.broadcast %4 : vector<1x48xf32> to vector<16x48xf32>
    %6 = arith.addf %3, %5 : vector<16x48xf32>
    %7 = vector.shape_cast %6 : vector<16x48xf32> to vector<2x8x48xf32>
    %8 = vector.extract_strided_slice %7 {offsets = [0, 0, 0], sizes = [2, 8, 16], strides = [1, 1, 1]} : vector<2x8x48xf32> to vector<2x8x16xf32>
    %9 = vector.extract_strided_slice %7 {offsets = [0, 0, 16], sizes = [2, 8, 16], strides = [1, 1, 1]} : vector<2x8x48xf32> to vector<2x8x16xf32>
    %10 = vector.extract_strided_slice %7 {offsets = [0, 0, 32], sizes = [2, 8, 16], strides = [1, 1, 1]} : vector<2x8x48xf32> to vector<2x8x16xf32>
    "tpu.trace_start"() <{level = 10 : i32, message = "bqd,bkd->bqk"}> : () -> ()
    %cst_6 = arith.constant dense<0.000000e+00> : vector<2x8x8xf32>
    %11 = tpu.matmul %8, %9, %cst_6 {dimension_numbers = #tpu.dot_dimension_numbers<[2], [2], [1], [1], [0, 0, 0, 1, 1, 1], [0], [0]>} : vector<2x8x16xf32>, vector<2x8x16xf32>, vector<2x8x8xf32> -> vector<2x8x8xf32>
    "tpu.trace_stop"() : () -> ()
    %cst_7 = arith.constant dense<0xFF800000> : vector<2x8xf32>
    %12 = vector.multi_reduction <maximumf>, %11, %cst_7 [2] : vector<2x8x8xf32> to vector<2x8xf32>
    %13 = vector.shape_cast %12 : vector<2x8xf32> to vector<2x8x1xf32>
    %14 = vector.broadcast %13 : vector<2x8x1xf32> to vector<2x8x8xf32>
    %15 = arith.subf %11, %14 : vector<2x8x8xf32>
    %16 = math.exp %15 : vector<2x8x8xf32>
    %cst_8 = arith.constant dense<0.000000e+00> : vector<2x8xf32>
    %17 = vector.multi_reduction <add>, %16, %cst_8 [2] : vector<2x8x8xf32> to vector<2x8xf32>
    %18 = vector.shape_cast %17 : vector<2x8xf32> to vector<2x8x1xf32>
    %19 = tpu.reciprocal %18 {approx = true} : vector<2x8x1xf32> -> vector<2x8x1xf32>
    %20 = vector.broadcast %19 : vector<2x8x1xf32> to vector<2x8x8xf32>
    %21 = arith.mulf %16, %20 : vector<2x8x8xf32>
    "tpu.trace_start"() <{level = 10 : i32, message = "bqk,bkd->bqd"}> : () -> ()
    %cst_9 = arith.constant dense<0.000000e+00> : vector<2x8x16xf32>
    %22 = tpu.matmul %21, %10, %cst_9 {dimension_numbers = #tpu.dot_dimension_numbers<[2], [1], [1], [2], [0, 0, 0, 1, 1, 2], [0], [0]>} : vector<2x8x8xf32>, vector<2x8x16xf32>, vector<2x8x16xf32> -> vector<2x8x16xf32>
    "tpu.trace_stop"() : () -> ()
    %23 = vector.shape_cast %22 : vector<2x8x16xf32> to vector<2x128xf32>
    %c0_10 = arith.constant 0 : index
    %c0_11 = arith.constant 0 : index
    %c0_12 = arith.constant 0 : index
    %24 = vector.load %arg4[%c0_10, %c0_11, %c0_12] : memref<1x2x128xf32, #tpu.memory_space<vmem>>, vector<1x2x128xf32>
    %25 = vector.shape_cast %24 : vector<1x2x128xf32> to vector<2x128xf32>
    %26 = vector.shape_cast %23 : vector<2x128xf32> to vector<1x2x128xf32>
    tpu.vector_store %arg4[%c0_10, %c0_11, %c0_12], %26 {strides = array<i32>} : memref<1x2x128xf32, #tpu.memory_space<vmem>>, vector<1x2x128xf32>,
    return
  }
  func.func @transform_0(%arg0: i32) -> (i32, i32, i32) {
    %c0_i32 = arith.constant 0 : i32
    %c0_i32_0 = arith.constant 0 : i32
    %c0_i32_1 = arith.constant 0 : i32
    return %arg0, %c0_i32, %c0_i32_0 : i32, i32, i32
  }
  func.func @transform_1(%arg0: i32) -> (i32, i32) {
    %c0_i32 = arith.constant 0 : i32
    %c0_i32_0 = arith.constant 0 : i32
    %c0_i32_1 = arith.constant 0 : i32
    return %c0_i32, %c0_i32_0 : i32, i32
  }
  func.func @transform_2(%arg0: i32) -> (i32, i32) {
    %c0_i32 = arith.constant 0 : i32
    %c0_i32_0 = arith.constant 0 : i32
    %c0_i32_1 = arith.constant 0 : i32
    return %c0_i32, %c0_i32_0 : i32, i32
  }
  func.func @transform_3(%arg0: i32) -> (i32, i32, i32) {
    %c0_i32 = arith.constant 0 : i32
    %c0_i32_0 = arith.constant 0 : i32
    %c0_i32_1 = arith.constant 0 : i32
    return %arg0, %c0_i32, %c0_i32_0 : i32, i32, i32
  }
}

</mosaic_0001>

<llo_original>
// kernel: attention_forward.1
$region0: #{attention_forward.1}
  #allocation0 [shape = 'u32[]', space=smem, size = 0x4, offset = 0x4, fixed_abs, tag = 'smem constant byte address 0x4 - core index']
  #allocation1 [shape = 'u32[144,128]{1,0:T(1,128)}', space=vmem, size = 0x12000, scoped, tag = 'internal scratch']
  %s0 = inlined_call_operand.hbm [shape: f32[4,8,32], index: 0, kind: input, shape index: {}]
  %s1 = inlined_call_operand.hbm [shape: f32[32,48], index: 1, kind: input, shape index: {}]
  %s2 = inlined_call_operand.vmem [shape: f32[1,48], index: 2, kind: input, shape index: {}]
  %s3 = inlined_call_operand.vmem [shape: f32[2,2,128], index: 3, kind: output, shape index: {}]
  %s4 = sld [smem:[#allocation0]]
  $region53: #{attention_forward.1} parent=0
    _
  %s6 = ssub.s32 1, %s4
  %s7 = scalar_select 0, %s6, %s4
  $region1: #{attention_forward.1} parent=0
    #allocation2 [shape = 'u8[16384]{0}', space=vmem, size = 0x4000, scoped, tag = 'input window, operand 0']
    #allocation3 [shape = 's32[2]{0}', space=sflag, size = 0x8, scoped, tag = 'scoped memory for attention_forward.1']
    #allocation4 [shape = 'u8[16384]{0}', space=vmem, size = 0x4000, scoped, tag = 'input window, operand 1, single buffered']
    #allocation5 [shape = 's32[1]{0}', space=sflag, size = 0x4, scoped, tag = 'scoped memory for attention_forward.1']
    %8 = vsyncpa [#allocation3], 0
    %s9 = scalar_lea.sflag [#allocation3], 1
    %10 = vsyncpa %s9, 0
    %11 = vsyncpa [#allocation5], 0
    loop: start=0, step=1, limit=4
    $region2: #{attention_forward.1} parent=1 // loop_pre_header
      _
    $region3: #{attention_forward.1} parent=1 // loop_header
      %s13 = sphi 0, %s17
      %p14 = scmp.ge.s32.totalorder %s13, 4
      %s23 = sphi 0, %s25
      %s26 = sphi 0, %s23
      %s27 = sphi 0, %s26
      %s43 = sphi 0, %s27
      %s47 = sphi 0, %s47
      %s49 = sphi 0, %s47
      %s50 = sphi 0, %s49
      %s64 = sphi 0, %s50
      %s68 = sphi 0, %s68
      %s70 = sphi 0, %s68
      %s71 = sphi 0, %s70
      %s85 = sphi 0, %s71
      %s91 = sphi 0, %s93
      %s94 = sphi 0, %s91
      %s95 = sphi 0, %s94
      %s111 = sphi 0, %s95
    $region4: #{attention_forward.1} parent=1 // loop_header_branch
      %16 = sbr.rel (%p14) target = $region8
    $region5: #{attention_forward.1} parent=1 // loop_body
      %s18 = ssub.s32 %s13, 1
      %s19 = ssub.s32 %s13, 2
      %s20 = sadd.s32 %s13, 1
      %s21 = ssub.s32 %s13, %s20
      %p22 = scmp.eq.s32.totalorder %s21, 0
      %s24 = sadd.s32 %s23, 1
      %s25 = scalar_select %p22, %s23, %s24
      %p28 = pneg %p22
      %p29 = scmp.eq.s32.totalorder %s13, 1
      %p30 = por %p28, %p29
      %p31 = scmp.ne.s32.totalorder %s23, %s26
      %p32 = scmp.eq.s32.totalorder %s13, 0
      %p33 = por %p31, %p32
      %p34 = scmp.ne.s32.totalorder %s23, %s26
      %p35 = scmp.eq.s32.totalorder %s18, 1
      %p36 = por %p34, %p35
      %p37 = scmp.ne.s32.totalorder %s26, %s27
      %p38 = scmp.eq.s32.totalorder %s18, 0
      %p39 = por %p37, %p38
      %p40 = scmp.ne.s32.totalorder %s26, %s27
      %p41 = scmp.eq.s32.totalorder %s19, 1
      %p42 = por %p40, %p41
      %p44 = scmp.ne.s32.totalorder %s27, %s43
      %p45 = scmp.eq.s32.totalorder %s19, 0
      %p46 = por %p44, %p45
      %s48 = sadd.s32 %s47, 1
      %p51 = scmp.eq.s32.totalorder %s13, 1
      %p52 = scmp.ne.s32.totalorder %s47, %s49
      %p53 = scmp.eq.s32.totalorder %s13, 0
      %p54 = por %p52, %p53
      %p55 = scmp.ne.s32.totalorder %s47, %s49
      %p56 = scmp.eq.s32.totalorder %s18, 1
      %p57 = por %p55, %p56
      %p58 = scmp.ne.s32.totalorder %s49, %s50
      %p59 = scmp.eq.s32.totalorder %s18, 0
      %p60 = por %p58, %p59
      %p61 = scmp.ne.s32.totalorder %s49, %s50
      %p62 = scmp.eq.s32.totalorder %s19, 1
      %p63 = por %p61, %p62
      %p65 = scmp.ne.s32.totalorder %s50, %s64
      %p66 = scmp.eq.s32.totalorder %s19, 0
      %p67 = por %p65, %p66
      %s69 = sadd.s32 %s68, 1
      %p72 = scmp.eq.s32.totalorder %s13, 1
      %p73 = scmp.ne.s32.totalorder %s68, %s70
      %p74 = scmp.eq.s32.totalorder %s13, 0
      %p75 = por %p73, %p74
      %p76 = scmp.ne.s32.totalorder %s68, %s70
      %p77 = scmp.eq.s32.totalorder %s18, 1
      %p78 = por %p76, %p77
      %p79 = scmp.ne.s32.totalorder %s70, %s71
      %p80 = scmp.eq.s32.totalorder %s18, 0
      %p81 = por %p79, %p80
      %p82 = scmp.ne.s32.totalorder %s70, %s71
      %p83 = scmp.eq.s32.totalorder %s19, 1
      %p84 = por %p82, %p83
      %p86 = scmp.ne.s32.totalorder %s71, %s85
      %p87 = scmp.eq.s32.totalorder %s19, 0
      %p88 = por %p86, %p87
      %s89 = ssub.s32 %s13, %s20
      %p90 = scmp.eq.s32.totalorder %s89, 0
      %s92 = sadd.s32 %s91, 1
      %s93 = scalar_select %p90, %s91, %s92
      %p96 = pneg %p90
      %p97 = scmp.eq.s32.totalorder %s13, 1
      %p98 = por %p96, %p97
      %p99 = scmp.ne.s32.totalorder %s91, %s94
      %p100 = scmp.eq.s32.totalorder %s13, 0
      %p101 = por %p99, %p100
      %p102 = scmp.ne.s32.totalorder %s91, %s94
      %p103 = scmp.eq.s32.totalorder %s18, 1
      %p104 = por %p102, %p103
      %p105 = scmp.ne.s32.totalorder %s94, %s95
      %p106 = scmp.eq.s32.totalorder %s18, 0
      %p107 = por %p105, %p106
      %p108 = scmp.ne.s32.totalorder %s94, %s95
      %p109 = scmp.eq.s32.totalorder %s19, 1
      %p110 = por %p108, %p109
      %p112 = scmp.ne.s32.totalorder %s95, %s111
      %p113 = scmp.eq.s32.totalorder %s19, 0
      %p114 = por %p112, %p113
      %p115 = scmp.le.s32.totalorder 1, %s13
      %p116 = scmp.lt.s32.totalorder %s13, 3
      %p117 = pnand %p115, %p116
      %p118 = pneg %p117
      // Predicated region
      $region9: #{attention_forward.1} parent=5 // pred_check
        _
      $region10: #{attention_forward.1} parent=5 // pred_check_branch
        %120 = sbr.rel (%p117) target = $region12
      $region11: #{attention_forward.1} parent=5 // pred_region
        %s121 = ssub.s32 %s13, 1
        // Predicated region
        $region13: #{attention_forward.1} parent=11 // pred_check
          %p122 = pneg %p60
        $region14: #{attention_forward.1} parent=11 // pred_check_branch
          %124 = sbr.rel (%p122) target = $region16
        $region15: #{attention_forward.1} parent=11 // pred_region
          %s126 = ssub.s32 512, 512
          %127 = vsyncadd [#allocation5], %s126
          %s128 = sshll.u32 [#allocation4], 4
          %s129 = int_to_ptr.vmem [resolvable:$true] %s128
          %134 = dma.hbm_to_vmem [thread:$0]  %s1, 512, %s129, [#allocation5], 128, 128, 8
        $region16: #{attention_forward.1} parent=11 // pred_fallthru
          _
        // Predicated region
        $region17: #{attention_forward.1} parent=11 // pred_check
          %p135 = pneg %p81
        $region18: #{attention_forward.1} parent=11 // pred_check_branch
          %137 = sbr.rel (%p135) target = $region20
        $region19: #{attention_forward.1} parent=11 // pred_region
          _
        $region20: #{attention_forward.1} parent=11 // pred_fallthru
          _
      $region12: #{attention_forward.1} parent=5 // pred_fallthru
        _
      %p138 = scmp.lt.s32.totalorder %s13, 2
      // Predicated region
      $region21: #{attention_forward.1} parent=5 // pred_check
        %p139 = pneg %p138
      $region22: #{attention_forward.1} parent=5 // pred_check_branch
        %141 = sbr.rel (%p139) target = $region24
      $region23: #{attention_forward.1} parent=5 // pred_region
        // Predicated region
        $region25: #{attention_forward.1} parent=23 // pred_check
          %p142 = pneg %p33
        $region26: #{attention_forward.1} parent=23 // pred_check_branch
          %144 = sbr.rel (%p142) target = $region28
        $region27: #{attention_forward.1} parent=23 // pred_region
          %s145 = sand.u32 %s23, 1
          %s146 = scalar_lea.sflag [#allocation3], %s145
          %s147 = sand.u32 %s23, 1
          %s148 = smul.addr %s147, 16
          %s149 = scalar_lea.vmem [#allocation2], %s148
          %s150 = smul.u32 2, %s13
          %s152 = ssub.s32 256, 256
          %153 = vsyncadd %s146, %s152
          %s154 = smul.addr %s150, 128
          %s155 = scalar_lea.hbm %s0, %s154
          %s156 = sshll.u32 %s149, 4
          %s157 = int_to_ptr.vmem [resolvable:$true] %s156
          %162 = dma.hbm_to_vmem [thread:$0]  %s155, 256, %s157, %s146, 128, 128, 8
        $region28: #{attention_forward.1} parent=23 // pred_fallthru
          _
      $region24: #{attention_forward.1} parent=5 // pred_fallthru
        _
      %p163 = scmp.le.s32.totalorder 1, %s13
      %p164 = scmp.lt.s32.totalorder %s13, 3
      %p165 = pnand %p163, %p164
      %p166 = pneg %p165
      // Predicated region
      $region29: #{attention_forward.1} parent=5 // pred_check
        _
      $region30: #{attention_forward.1} parent=5 // pred_check_branch
        %168 = sbr.rel (%p165) target = $region32
      $region31: #{attention_forward.1} parent=5 // pred_region
        %s169 = ssub.s32 %s13, 1
        %s170 = sand.u32 %s26, 1
        %s171 = scalar_lea.sflag [#allocation3], %s170
        %s172 = sand.u32 %s26, 1
        %s173 = smul.addr %s172, 16
        %s174 = scalar_lea.vmem [#allocation2], %s173
        // Predicated region
        $region33: #{attention_forward.1} parent=31 // pred_check
          %p175 = pneg %p39
        $region34: #{attention_forward.1} parent=31 // pred_check_branch
          %177 = sbr.rel (%p175) target = $region36
        $region35: #{attention_forward.1} parent=31 // pred_region
          %178 = dma.done %s171, 256
        $region36: #{attention_forward.1} parent=31 // pred_fallthru
          _
        // Predicated region
        $region37: #{attention_forward.1} parent=31 // pred_check
          %p179 = pneg %p60
        $region38: #{attention_forward.1} parent=31 // pred_check_branch
          %181 = sbr.rel (%p179) target = $region40
        $region39: #{attention_forward.1} parent=31 // pred_region
          %182 = dma.done [#allocation5], 512
        $region40: #{attention_forward.1} parent=31 // pred_fallthru
          _
        %s183 = sand.u32 %s26, 1
        %s184 = scalar_lea.sflag [#allocation3], %s183
        %s185 = sand.u32 %s26, 1
        %s186 = smul.addr %s185, 16
        %s187 = scalar_lea.vmem [#allocation2], %s186
        %p188 = pneg %p39
        %p189 = pneg %p36
        %p190 = pneg %p60
        %p191 = pneg %p57
        %p192 = pneg %p81
        %p193 = pneg %p78
        %p194 = pneg %p107
        %p195 = pneg %p104
        %p196 = scmp.lt.s32.totalorder %s18, 1
        %s197 = scalar_select %p196, %s18, 1
        %s198 = smul.addr %s197, 2
        %s199 = scalar_lea.vmem %s3, %s198
        %s200 = smul.u32 2, %s18
        %p201 = scmp.lt.s32.totalorder %s18, 1
        %s202 = scalar_select %p201, %s18, 1
        %s203 = smul.addr %s202, 2
        %s204 = scalar_lea.vmem %s3, %s203
        %v205 = vld [vmem:[%s174] sm:$0xff]
        %v206 = vld [vmem:[%s174 + $0x8] sm:$0xff]
        %v207 = vld [vmem:[#allocation4] sm:$0xff]
        %v208 = vld [vmem:[#allocation4 + $0x8] sm:$0xff]
        %v209 = vld [vmem:[#allocation4 + $0x10] sm:$0xff]
        %v210 = vld [vmem:[#allocation4 + $0x18] sm:$0xff]
        %v211 = vld [vmem:[%s2] sm:$0x1]
        %v213 = vlaneseq
        %v214 = vshrl.u32 %v213, 7
        %v215 = vsub.s32 0, %v214
        %v216 = vrot.slane %v211, %v215
        %vm218 = vcmask 261120
        %v220 = vsel %vm218, %v205, 0
        %v223 = vsel %vm218, %v206, 0
        %225 = vmatprep.subr.mxu0 0.0
        %226 = vmatpush1.msra.mxu0 0.0
        %227 = vmatprep.subr.mxu0 0.0
        %228 = vmatpush1.msra.mxu0 0.0
        %229 = vmatprep.subr.mxu0 0.0
        %230 = vmatpush1.msra.mxu0 0.0
        %231 = vmatprep.subr.mxu0 0.0
        %232 = vmatpush1.msra.mxu0 0.0
        %233 = vmatprep.subr.mxu0 0.0
        %234 = vmatpush1.msra.mxu0 0.0
        %235 = vmatprep.subr.mxu0 0.0
        %236 = vmatpush1.msra.mxu0 0.0
        %237 = vmatprep.subr.mxu0 0.0
        %238 = vmatpush1.msra.mxu0 0.0
        %239 = vmatprep.subr.mxu0 0.0
        %240 = vmatpush1.msra.mxu0 0.0
        %241 = vmatprep.subr.mxu0 0.0
        %242 = vmatpush1.msra.mxu0 0.0
        %243 = vmatprep.subr.mxu0 0.0
        %244 = vmatpush1.msra.mxu0 0.0
        %245 = vmatprep.subr.mxu0 0.0
        %246 = vmatpush1.msra.mxu0 0.0
        %247 = vmatprep.subr.mxu0 0.0
        %248 = vmatpush1.msra.mxu0 0.0
        %249 = vmatprep.subr.mxu0 0.0
        %250 = vmatpush1.msra.mxu0 %v210
        %251 = vmatprep.subr.mxu0 0.0
        %252 = vmatpush1.msra.mxu0 %v209
        %253 = vmatprep.subr.mxu0 0.0
        %254 = vmatpush1.msra.mxu0 %v208
        %255 = vmatprep.subr.mxu0 0.0
        %256 = vmatpush1.msra.mxu0 %v207
        %257 = vmatprep.subr.mxu0 0.0
        %258 = vmatpush2.msra.mxu0 0.0
        %259 = vmatprep.subr.mxu0 0.0
        %260 = vmatpush2.msra.mxu0 0.0
        %261 = vmatprep.subr.mxu0 0.0
        %262 = vmatpush2.msra.mxu0 0.0
        %263 = vmatprep.subr.mxu0 0.0
        %264 = vmatpush2.msra.mxu0 0.0
        %265 = vmatprep.subr.mxu0 0.0
        %266 = vmatpush2.msra.mxu0 0.0
        %267 = vmatprep.subr.mxu0 0.0
        %268 = vmatpush2.msra.mxu0 0.0
        %269 = vmatprep.subr.mxu0 0.0
        %270 = vmatpush2.msra.mxu0 0.0
        %271 = vmatprep.subr.mxu0 0.0
        %272 = vmatpush2.msra.mxu0 0.0
        %273 = vmatprep.subr.mxu0 0.0
        %274 = vmatpush2.msra.mxu0 0.0
        %275 = vmatprep.subr.mxu0 0.0
        %276 = vmatpush2.msra.mxu0 0.0
        %277 = vmatprep.subr.mxu0 0.0
        %278 = vmatpush2.msra.mxu0 0.0
        %279 = vmatprep.subr.mxu0 0.0
        %280 = vmatpush2.msra.mxu0 0.0
        %281 = vmatprep.subr.mxu0 0.0
        %282 = vmatpush2.msra.mxu0 0.0
        %283 = vmatprep.subr.mxu0 0.0
        %284 = vmatpush2.msra.mxu0 0.0
        %285 = vmatprep.subr.mxu0 0.0
        %286 = vmatpush2.msra.mxu0 0.0
        %287 = vmatprep.subr.mxu0 0.0
        %288 = vmatpush2.msra.mxu0 0.0
        %289 = vmatprep.mubr.f32.mxu0 0.0
        %290 = vmatmul.mubr.f32.gmra.mxu0 %v220
        %v291 = vpop.f32.mrf.mxu0
        %v292 = vadd.f32 %v216, %v291
        %v293 = vpop.f32.mrf.mxu0
        %294 = vmatprep.mubr.f32.mxu0 0.0
        %295 = vmatmul.mubr.f32.gmra.mxu0 %v223
        %v296 = vpop.f32.mrf.mxu0
        %v297 = vadd.f32 %v216, %v296
        %v298 = vpop.f32.mrf.mxu0
        %299 = vdwg.mxu0
        %301 = vrot.lane.b32.xlu0 %v292, 112
        %v302 = vpop.permute.xlu0 %301
        %vm303 = vcmask 130048
        %v304 = vsel %vm303, %v292, 0
        %v306 = vsel %vm303, %v302, 0
        %308 = vmatprep.subr.mxu0 0.0
        %309 = vmatpush1.xpose.msra.mxu0 0.0
        %310 = vmatprep.subr.mxu0 0.0
        %311 = vmatpush1.xpose.msra.mxu0 0.0
        %312 = vmatprep.subr.mxu0 0.0
        %313 = vmatpush1.xpose.msra.mxu0 0.0
        %314 = vmatprep.subr.mxu0 0.0
        %315 = vmatpush1.xpose.msra.mxu0 0.0
        %316 = vmatprep.subr.mxu0 0.0
        %317 = vmatpush1.xpose.msra.mxu0 0.0
        %318 = vmatprep.subr.mxu0 0.0
        %319 = vmatpush1.xpose.msra.mxu0 0.0
        %320 = vmatprep.subr.mxu0 0.0
        %321 = vmatpush1.xpose.msra.mxu0 0.0
        %322 = vmatprep.subr.mxu0 0.0
        %323 = vmatpush1.xpose.msra.mxu0 0.0
        %324 = vmatprep.subr.mxu0 0.0
        %325 = vmatpush1.xpose.msra.mxu0 0.0
        %326 = vmatprep.subr.mxu0 0.0
        %327 = vmatpush1.xpose.msra.mxu0 0.0
        %328 = vmatprep.subr.mxu0 0.0
        %329 = vmatpush1.xpose.msra.mxu0 0.0
        %330 = vmatprep.subr.mxu0 0.0
        %331 = vmatpush1.xpose.msra.mxu0 0.0
        %332 = vmatprep.subr.mxu0 0.0
        %333 = vmatpush1.xpose.msra.mxu0 0.0
        %334 = vmatprep.subr.mxu0 0.0
        %335 = vmatpush1.xpose.msra.mxu0 0.0
        %336 = vmatprep.subr.mxu0 0.0
        %337 = vmatpush1.xpose.msra.mxu0 0.0
        %338 = vmatprep.subr.mxu0 0.0
        %339 = vmatpush1.xpose.msra.mxu0 %v306
        %340 = vmatprep.subr.mxu0 0.0
        %341 = vmatpush2.xpose.msra.mxu0 0.0
        %342 = vmatprep.subr.mxu0 0.0
        %343 = vmatpush2.xpose.msra.mxu0 0.0
        %344 = vmatprep.subr.mxu0 0.0
        %345 = vmatpush2.xpose.msra.mxu0 0.0
        %346 = vmatprep.subr.mxu0 0.0
        %347 = vmatpush2.xpose.msra.mxu0 0.0
        %348 = vmatprep.subr.mxu0 0.0
        %349 = vmatpush2.xpose.msra.mxu0 0.0
        %350 = vmatprep.subr.mxu0 0.0
        %351 = vmatpush2.xpose.msra.mxu0 0.0
        %352 = vmatprep.subr.mxu0 0.0
        %353 = vmatpush2.xpose.msra.mxu0 0.0
        %354 = vmatprep.subr.mxu0 0.0
        %355 = vmatpush2.xpose.msra.mxu0 0.0
        %356 = vmatprep.subr.mxu0 0.0
        %357 = vmatpush2.xpose.msra.mxu0 0.0
        %358 = vmatprep.subr.mxu0 0.0
        %359 = vmatpush2.xpose.msra.mxu0 0.0
        %360 = vmatprep.subr.mxu0 0.0
        %361 = vmatpush2.xpose.msra.mxu0 0.0
        %362 = vmatprep.subr.mxu0 0.0
        %363 = vmatpush2.xpose.msra.mxu0 0.0
        %364 = vmatprep.subr.mxu0 0.0
        %365 = vmatpush2.xpose.msra.mxu0 0.0
        %366 = vmatprep.subr.mxu0 0.0
        %367 = vmatpush2.xpose.msra.mxu0 0.0
        %368 = vmatprep.subr.mxu0 0.0
        %369 = vmatpush2.xpose.msra.mxu0 0.0
        %370 = vmatprep.subr.mxu0 0.0
        %371 = vmatpush2.xpose.msra.mxu0 0.0
        %372 = vmatprep.mubr.f32.mxu0 0.0
        %373 = vmatmul.mubr.f32.gmra.mxu0 %v304
        %v374 = vpop.f32.mrf.mxu0
        %v375 = vadd.f32 0.0, %v374
        %v376 = vpop.f32.mrf.mxu0
        %377 = vdwg.mxu0
        %379 = vrot.lane.b32.xlu0 %v297, 112
        %v380 = vpop.permute.xlu0 %379
        %v381 = vsel %vm303, %v297, 0
        %v383 = vsel %vm303, %v380, 0
        %385 = vmatprep.subr.mxu0 0.0
        %386 = vmatpush1.xpose.msra.mxu0 0.0
        %387 = vmatprep.subr.mxu0 0.0
        %388 = vmatpush1.xpose.msra.mxu0 0.0
        %389 = vmatprep.subr.mxu0 0.0
        %390 = vmatpush1.xpose.msra.mxu0 0.0
        %391 = vmatprep.subr.mxu0 0.0
        %392 = vmatpush1.xpose.msra.mxu0 0.0
        %393 = vmatprep.subr.mxu0 0.0
        %394 = vmatpush1.xpose.msra.mxu0 0.0
        %395 = vmatprep.subr.mxu0 0.0
        %396 = vmatpush1.xpose.msra.mxu0 0.0
        %397 = vmatprep.subr.mxu0 0.0
        %398 = vmatpush1.xpose.msra.mxu0 0.0
        %399 = vmatprep.subr.mxu0 0.0
        %400 = vmatpush1.xpose.msra.mxu0 0.0
        %401 = vmatprep.subr.mxu0 0.0
        %402 = vmatpush1.xpose.msra.mxu0 0.0
        %403 = vmatprep.subr.mxu0 0.0
        %404 = vmatpush1.xpose.msra.mxu0 0.0
        %405 = vmatprep.subr.mxu0 0.0
        %406 = vmatpush1.xpose.msra.mxu0 0.0
        %407 = vmatprep.subr.mxu0 0.0
        %408 = vmatpush1.xpose.msra.mxu0 0.0
        %409 = vmatprep.subr.mxu0 0.0
        %410 = vmatpush1.xpose.msra.mxu0 0.0
        %411 = vmatprep.subr.mxu0 0.0
        %412 = vmatpush1.xpose.msra.mxu0 0.0
        %413 = vmatprep.subr.mxu0 0.0
        %414 = vmatpush1.xpose.msra.mxu0 0.0
        %415 = vmatprep.subr.mxu0 0.0
        %416 = vmatpush1.xpose.msra.mxu0 %v383
        %417 = vmatprep.subr.mxu0 0.0
        %418 = vmatpush2.xpose.msra.mxu0 0.0
        %419 = vmatprep.subr.mxu0 0.0
        %420 = vmatpush2.xpose.msra.mxu0 0.0
        %421 = vmatprep.subr.mxu0 0.0
        %422 = vmatpush2.xpose.msra.mxu0 0.0
        %423 = vmatprep.subr.mxu0 0.0
        %424 = vmatpush2.xpose.msra.mxu0 0.0
        %425 = vmatprep.subr.mxu0 0.0
        %426 = vmatpush2.xpose.msra.mxu0 0.0
        %427 = vmatprep.subr.mxu0 0.0
        %428 = vmatpush2.xpose.msra.mxu0 0.0
        %429 = vmatprep.subr.mxu0 0.0
        %430 = vmatpush2.xpose.msra.mxu0 0.0
        %431 = vmatprep.subr.mxu0 0.0
        %432 = vmatpush2.xpose.msra.mxu0 0.0
        %433 = vmatprep.subr.mxu0 0.0
        %434 = vmatpush2.xpose.msra.mxu0 0.0
        %435 = vmatprep.subr.mxu0 0.0
        %436 = vmatpush2.xpose.msra.mxu0 0.0
        %437 = vmatprep.subr.mxu0 0.0
        %438 = vmatpush2.xpose.msra.mxu0 0.0
        %439 = vmatprep.subr.mxu0 0.0
        %440 = vmatpush2.xpose.msra.mxu0 0.0
        %441 = vmatprep.subr.mxu0 0.0
        %442 = vmatpush2.xpose.msra.mxu0 0.0
        %443 = vmatprep.subr.mxu0 0.0
        %444 = vmatpush2.xpose.msra.mxu0 0.0
        %445 = vmatprep.subr.mxu0 0.0
        %446 = vmatpush2.xpose.msra.mxu0 0.0
        %447 = vmatprep.subr.mxu0 0.0
        %448 = vmatpush2.xpose.msra.mxu0 0.0
        %449 = vmatprep.mubr.f32.mxu0 0.0
        %450 = vmatmul.mubr.f32.gmra.mxu0 %v381
        %v451 = vpop.f32.mrf.mxu0
        %v452 = vadd.f32 0.0, %v451
        %v453 = vpop.f32.mrf.mxu0
        %454 = vdwg.mxu0
        %vm455 = vcmask 64512
        %v456 = vsel %vm455, %v375, -inf
        %457 = vmax.xlane.f32.xlu0 %v456
        %v458 = vpop.xlane.xlu0 %457
        %v459 = vsel %vm455, %v452, -inf
        %460 = vmax.xlane.f32.xlu0 %v459
        %v461 = vpop.xlane.xlu0 %460
        %v462 = vsub.f32 %v375, %v458
        %v463 = vsub.f32 %v452, %v461
        %v464 = vmul.f32 %v462, 1.442695
        %v465 = vpow.pop %v464
        %v466 = vmul.f32 %v463, 1.442695
        %v467 = vpow.pop %v466
        %v468 = vsel %vm455, %v465, 0.0
        %469 = vadd.xlane.f32.xlu0 %v468
        %v470 = vpop.xlane.xlu0 %469
        %v471 = vsel %vm455, %v467, 0.0
        %472 = vadd.xlane.f32.xlu0 %v471
        %v473 = vpop.xlane.xlu0 %472
        %v474 = vrcp.pop %v470
        %v475 = vrcp.pop %v473
        %v476 = vmul.f32 %v465, %v474
        %v477 = vmul.f32 %v467, %v475
        %478 = vrot.lane.b32.xlu0 %v292, 96
        %v479 = vpop.permute.xlu0 %478
        %v482 = vsel %vm455, %v476, 0
        %484 = vmatprep.subr.mxu0 0.0
        %485 = vmatpush1.msra.mxu0 0.0
        %486 = vmatprep.subr.mxu0 0.0
        %487 = vmatpush1.msra.mxu0 0.0
        %488 = vmatprep.subr.mxu0 0.0
        %489 = vmatpush1.msra.mxu0 0.0
        %490 = vmatprep.subr.mxu0 0.0
        %491 = vmatpush1.msra.mxu0 0.0
        %492 = vmatprep.subr.mxu0 0.0
        %493 = vmatpush1.msra.mxu0 0.0
        %494 = vmatprep.subr.mxu0 0.0
        %495 = vmatpush1.msra.mxu0 0.0
        %496 = vmatprep.subr.mxu0 0.0
        %497 = vmatpush1.msra.mxu0 0.0
        %498 = vmatprep.subr.mxu0 0.0
        %499 = vmatpush1.msra.mxu0 0.0
        %500 = vmatprep.subr.mxu0 0.0
        %501 = vmatpush1.msra.mxu0 0.0
        %502 = vmatprep.subr.mxu0 0.0
        %503 = vmatpush1.msra.mxu0 0.0
        %504 = vmatprep.subr.mxu0 0.0
        %505 = vmatpush1.msra.mxu0 0.0
        %506 = vmatprep.subr.mxu0 0.0
        %507 = vmatpush1.msra.mxu0 0.0
        %508 = vmatprep.subr.mxu0 0.0
        %509 = vmatpush1.msra.mxu0 0.0
        %510 = vmatprep.subr.mxu0 0.0
        %511 = vmatpush1.msra.mxu0 0.0
        %512 = vmatprep.subr.mxu0 0.0
        %513 = vmatpush1.msra.mxu0 0.0
        %514 = vmatprep.subr.mxu0 0.0
        %515 = vmatpush1.msra.mxu0 %v479
        %516 = vmatprep.subr.mxu0 0.0
        %517 = vmatpush2.msra.mxu0 0.0
        %518 = vmatprep.subr.mxu0 0.0
        %519 = vmatpush2.msra.mxu0 0.0
        %520 = vmatprep.subr.mxu0 0.0
        %521 = vmatpush2.msra.mxu0 0.0
        %522 = vmatprep.subr.mxu0 0.0
        %523 = vmatpush2.msra.mxu0 0.0
        %524 = vmatprep.subr.mxu0 0.0
        %525 = vmatpush2.msra.mxu0 0.0
        %526 = vmatprep.subr.mxu0 0.0
        %527 = vmatpush2.msra.mxu0 0.0
        %528 = vmatprep.subr.mxu0 0.0
        %529 = vmatpush2.msra.mxu0 0.0
        %530 = vmatprep.subr.mxu0 0.0
        %531 = vmatpush2.msra.mxu0 0.0
        %532 = vmatprep.subr.mxu0 0.0
        %533 = vmatpush2.msra.mxu0 0.0
        %534 = vmatprep.subr.mxu0 0.0
        %535 = vmatpush2.msra.mxu0 0.0
        %536 = vmatprep.subr.mxu0 0.0
        %537 = vmatpush2.msra.mxu0 0.0
        %538 = vmatprep.subr.mxu0 0.0
        %539 = vmatpush2.msra.mxu0 0.0
        %540 = vmatprep.subr.mxu0 0.0
        %541 = vmatpush2.msra.mxu0 0.0
        %542 = vmatprep.subr.mxu0 0.0
        %543 = vmatpush2.msra.mxu0 0.0
        %544 = vmatprep.subr.mxu0 0.0
        %545 = vmatpush2.msra.mxu0 0.0
        %546 = vmatprep.subr.mxu0 0.0
        %547 = vmatpush2.msra.mxu0 0.0
        %548 = vmatprep.mubr.f32.mxu0 0.0
        %549 = vmatmul.mubr.f32.gmra.mxu0 %v482
        %v550 = vpop.f32.mrf.mxu0
        %v551 = vadd.f32 0.0, %v550
        %v552 = vpop.f32.mrf.mxu0
        %553 = vdwg.mxu0
        %554 = vrot.lane.b32.xlu0 %v297, 96
        %v555 = vpop.permute.xlu0 %554
        %v558 = vsel %vm455, %v477, 0
        %560 = vmatprep.subr.mxu0 0.0
        %561 = vmatpush1.msra.mxu0 0.0
        %562 = vmatprep.subr.mxu0 0.0
        %563 = vmatpush1.msra.mxu0 0.0
        %564 = vmatprep.subr.mxu0 0.0
        %565 = vmatpush1.msra.mxu0 0.0
        %566 = vmatprep.subr.mxu0 0.0
        %567 = vmatpush1.msra.mxu0 0.0
        %568 = vmatprep.subr.mxu0 0.0
        %569 = vmatpush1.msra.mxu0 0.0
        %570 = vmatprep.subr.mxu0 0.0
        %571 = vmatpush1.msra.mxu0 0.0
        %572 = vmatprep.subr.mxu0 0.0
        %573 = vmatpush1.msra.mxu0 0.0
        %574 = vmatprep.subr.mxu0 0.0
        %575 = vmatpush1.msra.mxu0 0.0
        %576 = vmatprep.subr.mxu0 0.0
        %577 = vmatpush1.msra.mxu0 0.0
        %578 = vmatprep.subr.mxu0 0.0
        %579 = vmatpush1.msra.mxu0 0.0
        %580 = vmatprep.subr.mxu0 0.0
        %581 = vmatpush1.msra.mxu0 0.0
        %582 = vmatprep.subr.mxu0 0.0
        %583 = vmatpush1.msra.mxu0 0.0
        %584 = vmatprep.subr.mxu0 0.0
        %585 = vmatpush1.msra.mxu0 0.0
        %586 = vmatprep.subr.mxu0 0.0
        %587 = vmatpush1.msra.mxu0 0.0
        %588 = vmatprep.subr.mxu0 0.0
        %589 = vmatpush1.msra.mxu0 0.0
        %590 = vmatprep.subr.mxu0 0.0
        %591 = vmatpush1.msra.mxu0 %v555
        %592 = vmatprep.subr.mxu0 0.0
        %593 = vmatpush2.msra.mxu0 0.0
        %594 = vmatprep.subr.mxu0 0.0
        %595 = vmatpush2.msra.mxu0 0.0
        %596 = vmatprep.subr.mxu0 0.0
        %597 = vmatpush2.msra.mxu0 0.0
        %598 = vmatprep.subr.mxu0 0.0
        %599 = vmatpush2.msra.mxu0 0.0
        %600 = vmatprep.subr.mxu0 0.0
        %601 = vmatpush2.msra.mxu0 0.0
        %602 = vmatprep.subr.mxu0 0.0
        %603 = vmatpush2.msra.mxu0 0.0
        %604 = vmatprep.subr.mxu0 0.0
        %605 = vmatpush2.msra.mxu0 0.0
        %606 = vmatprep.subr.mxu0 0.0
        %607 = vmatpush2.msra.mxu0 0.0
        %608 = vmatprep.subr.mxu0 0.0
        %609 = vmatpush2.msra.mxu0 0.0
        %610 = vmatprep.subr.mxu0 0.0
        %611 = vmatpush2.msra.mxu0 0.0
        %612 = vmatprep.subr.mxu0 0.0
        %613 = vmatpush2.msra.mxu0 0.0
        %614 = vmatprep.subr.mxu0 0.0
        %615 = vmatpush2.msra.mxu0 0.0
        %616 = vmatprep.subr.mxu0 0.0
        %617 = vmatpush2.msra.mxu0 0.0
        %618 = vmatprep.subr.mxu0 0.0
        %619 = vmatpush2.msra.mxu0 0.0
        %620 = vmatprep.subr.mxu0 0.0
        %621 = vmatpush2.msra.mxu0 0.0
        %622 = vmatprep.subr.mxu0 0.0
        %623 = vmatpush2.msra.mxu0 0.0
        %624 = vmatprep.mubr.f32.mxu0 0.0
        %625 = vmatmul.mubr.f32.gmra.mxu0 %v558
        %v626 = vpop.f32.mrf.mxu0
        %v627 = vadd.f32 0.0, %v626
        %v628 = vpop.f32.mrf.mxu0
        %629 = vdwg.mxu0
        %v630 = vcombine.high %v551, 0.0
        %v632 = vunpack.c.l.s4 1983009808
        %v633 = vunpack.c.0.s8 %v632
        %v634 = vlaneseq
        %v635 = vshrl.u32 %v634, 7
        %v636 = vsub.s32 %v633, %v635
        %v637 = vrot.slane %v551, %v636
        %v639 = vunpack.c.l.s4 1983009808
        %v640 = vunpack.c.0.s8 %v639
        %v641 = vlaneseq
        %v642 = vshrl.u32 %v641, 7
        %v643 = vsub.s32 %v640, %v642
        %v644 = vrot.slane %v630, %v643
        %v645 = vcombine.high %v627, 0.0
        %v647 = vunpack.c.l.s4 1983009808
        %v648 = vunpack.c.0.s8 %v647
        %v649 = vlaneseq
        %v650 = vshrl.u32 %v649, 7
        %v651 = vsub.s32 %v648, %v650
        %v652 = vrot.slane %v627, %v651
        %v654 = vunpack.c.l.s4 1983009808
        %v655 = vunpack.c.0.s8 %v654
        %v656 = vlaneseq
        %v657 = vshrl.u32 %v656, 7
        %v658 = vsub.s32 %v655, %v657
        %v659 = vrot.slane %v645, %v658
        %v660 = vcombine.low %v637, %v652
        %v661 = vcombine.high %v637, %v652
        %v663 = vunpack.c.l.s4 1934713408
        %v664 = vunpack.c.0.s8 %v663
        %v665 = vlaneseq
        %v666 = vshrl.u32 %v665, 7
        %v667 = vsub.s32 %v664, %v666
        %v668 = vrot.slane %v660, %v667
        %v670 = vunpack.c.l.s4 1934713408
        %v671 = vunpack.c.0.s8 %v670
        %v672 = vlaneseq
        %v673 = vshrl.u32 %v672, 7
        %v674 = vsub.s32 %v671, %v673
        %v675 = vrot.slane %v661, %v674
        %v676 = vcombine.low %v644, %v659
        %v677 = vcombine.high %v644, %v659
        %v679 = vunpack.c.l.s4 1934713408
        %v680 = vunpack.c.0.s8 %v679
        %v681 = vlaneseq
        %v682 = vshrl.u32 %v681, 7
        %v683 = vsub.s32 %v680, %v682
        %v684 = vrot.slane %v676, %v683
        %v686 = vunpack.c.l.s4 1934713408
        %v687 = vunpack.c.0.s8 %v686
        %v688 = vlaneseq
        %v689 = vshrl.u32 %v688, 7
        %v690 = vsub.s32 %v687, %v689
        %v691 = vrot.slane %v677, %v690
        %v692 = vcombine.high %v668, 0.0
        %v693 = vcombine.high %v675, 0.0
        %v694 = vcombine.high %v684, 0.0
        %v695 = vcombine.high %v691, 0.0
        %697 = vrot.lane.b32.xlu0 %v692, 16
        %v698 = vpop.permute.xlu0 %697
        %701 = vrot.lane.b32.xlu0 %v675, 32
        %v702 = vpop.permute.xlu0 %701
        %705 = vrot.lane.b32.xlu0 %v693, 48
        %v706 = vpop.permute.xlu0 %705
        %709 = vrot.lane.b32.xlu0 %v684, 64
        %v710 = vpop.permute.xlu0 %709
        %713 = vrot.lane.b32.xlu0 %v694, 80
        %v714 = vpop.permute.xlu0 %713
        %717 = vrot.lane.b32.xlu0 %v691, 96
        %v718 = vpop.permute.xlu0 %717
        %721 = vrot.lane.b32.xlu0 %v695, 112
        %v722 = vpop.permute.xlu0 %721
        %v724 = vsel %vm303, %v668, %v698
        %v725 = vsel %vm218, %v724, %v702
        %vm726 = vcmask 392192
        %v727 = vsel %vm726, %v725, %v706
        %vm728 = vcmask 523264
        %v729 = vsel %vm728, %v727, %v710
        %vm730 = vcmask 654336
        %v731 = vsel %vm730, %v729, %v714
        %vm732 = vcmask 785408
        %v733 = vsel %vm732, %v731, %v718
        %vm734 = vcmask 916480
        %v735 = vsel %vm734, %v733, %v722
        %736 = vst [vmem:[%s204] sm:$0x3] %v735
        %p737 = scmp.lt.s32.totalorder %s18, 1
        %s738 = scalar_select %p737, %s18, 1
        %s739 = smul.addr %s738, 2
        %s740 = scalar_lea.vmem %s3, %s739
        // Predicated region
        $region41: #{attention_forward.1} parent=31 // pred_check
          %p741 = pneg %p104
        $region42: #{attention_forward.1} parent=31 // pred_check_branch
          %743 = sbr.rel (%p741) target = $region44
        $region43: #{attention_forward.1} parent=31 // pred_region
          _
        $region44: #{attention_forward.1} parent=31 // pred_fallthru
          _
      $region32: #{attention_forward.1} parent=5 // pred_fallthru
        _
      %p744 = scmp.le.s32.totalorder 2, %s13
      // Predicated region
      $region45: #{attention_forward.1} parent=5 // pred_check
        %p745 = pneg %p744
      $region46: #{attention_forward.1} parent=5 // pred_check_branch
        %747 = sbr.rel (%p745) target = $region48
      $region47: #{attention_forward.1} parent=5 // pred_region
        %s748 = ssub.s32 %s13, 2
        // Predicated region
        $region49: #{attention_forward.1} parent=47 // pred_check
          %p749 = pneg %p110
        $region50: #{attention_forward.1} parent=47 // pred_check_branch
          %751 = sbr.rel (%p749) target = $region52
        $region51: #{attention_forward.1} parent=47 // pred_region
          %p752 = scmp.lt.s32.totalorder %s19, 1
          %s753 = scalar_select %p752, %s19, 1
          %s754 = smul.addr %s753, 2
          %s755 = scalar_lea.vmem %s3, %s754
        $region52: #{attention_forward.1} parent=47 // pred_fallthru
          _
      $region48: #{attention_forward.1} parent=5 // pred_fallthru
        _
    $region6: #{attention_forward.1} parent=1 // loop_footer
      %s17 = sadd.s32 1, %s13
    $region7: #{attention_forward.1} parent=1 // loop_footer_branch
      %12 = sbr.rel target = $region3
    $region8: #{attention_forward.1} parent=1 // loop_exit
      _
    %756 = vsyncpa [#allocation3], 1
    %s757 = scalar_lea.sflag [#allocation3], 1
    %758 = vsyncpa %s757, 1
    %759 = vsyncpa [#allocation5], 1

</llo_original>
